<compile_context>
chip_gen: v7x
topology: tpu7x:2x2x1
jax: 0.10.0
libtpu: 0.0.40
codegen_flags: <defaults>
</compile_context>

<pallas_src>
import functools

import jax
import jax.numpy as jnp
from jax.experimental import pallas as pl
from jax.experimental.pallas import tpu as pltpu


def _round_up(n, m):
    return ((n + m - 1) // m) * m


def actor_critic_kernel(x_ref, w_ref, out_ref, *, action_dim):
    """Fused ActorCritic forward for one batch tile.

    x_ref  : [tm, K1p]       states with a ones column at col S (bias fold), zero-padded
    w_ref  : [K1p + L, L]    rows 0..K1p-1 = layer-1 slab, rows K1p.. = layer-2 slab
    out_ref: [tm, L]         cols 0..A-1 = softmax probs, col A = value, rest = 0
    """
    k1 = x_ref.shape[1]

    x = x_ref[...]
    w1 = w_ref[:k1, :]            # [K1p, L]  (K1p multiple of 8 -> tile-aligned split)
    w2 = w_ref[k1:, :]            # [L,   L]

    # Layer 1: both heads (and the layer-1 biases, via x's ones column) in one
    # MXU push.  Lane 2H of h is a baked-in 1.0 that carries the layer-2 bias.
    h = jnp.maximum(jnp.dot(x, w1, preferred_element_type=jnp.float32), 0.0)

    # Layer 2: block-diagonal (actor logits | critic value | zero padding) plus
    # biases, in one MXU push.
    z = jnp.dot(h, w2, preferred_element_type=jnp.float32)

    col = jax.lax.broadcasted_iota(jnp.int32, z.shape, 1)
    is_logit = col < action_dim

    # Numerically-stable softmax over the first A lanes only (exact divide so
    # rows sum to 1 within f32 rounding).
    masked = jnp.where(is_logit, z, jnp.float32(-1e30))
    m = jnp.max(masked, axis=1, keepdims=True)
    e = jnp.exp(masked - m)
    denom = jnp.sum(e, axis=1, keepdims=True)
    probs = e / denom

    # Single lane-dense store: [probs | value | zeros].
    out_ref[...] = jnp.where(is_logit, probs, z).astype(out_ref.dtype)


def pack_params(p):
    """One-time host-side packing of PyTorch-layout params into a single slab.

    Layout (L = padded lane width, K1p = round_up(S+1, 8)):
      rows 0..K1p-1  : layer-1 slab  [K1p, L]
          [:S,  :H]   = wa1        [:S, H:2H]  = wc1
          [ S,  :H]   = ba1        [ S, H:2H]  = bc1      [S, 2H] = 1.0
      rows K1p..     : layer-2 slab [L, L]
          [:H,  :A]   = wa2        [H:2H, A]   = wc2[:,0]
          [2H,  :A]   = ba2        [2H,   A]   = bc2
    """
    S, H = p["wa1"].shape
    A = p["wa2"].shape[1]
    K1p = _round_up(S + 1, 8)
    L = max(_round_up(2 * H + 1, 128), _round_up(A + 1, 128))

    w1 = jnp.zeros((K1p, L), jnp.float32)
    w1 = w1.at[:S, :H].set(p["wa1"])
    w1 = w1.at[:S, H:2 * H].set(p["wc1"])
    w1 = w1.at[S, :H].set(p["ba1"][0])
    w1 = w1.at[S, H:2 * H].set(p["bc1"][0])
    w1 = w1.at[S, 2 * H].set(1.0)            # ones lane in h -> carries layer-2 bias

    w2 = jnp.zeros((L, L), jnp.float32)
    w2 = w2.at[:H, :A].set(p["wa2"])
    w2 = w2.at[H:2 * H, A].set(p["wc2"][:, 0])
    w2 = w2.at[2 * H, :A].set(p["ba2"][0])
    w2 = w2.at[2 * H, A].set(p["bc2"][0, 0])

    slab = jnp.concatenate([w1, w2], axis=0)  # [K1p + L, L]
    return slab


def actor_critic_forward(x, slab, *, state_dim, action_dim, block_b=512):
    """Fused ActorCritic forward.  Returns (probs [B, A], values [B, 1])."""
    B = x.shape[0]
    total_rows, L = slab.shape
    K1p = total_rows - L

    # Batch tile: multiple of 8 sublanes; pad B so the grid divides exactly.
    tm = min(block_b, _round_up(B, 8))
    Bp = _round_up(B, tm)

    # Host-side augmentation: [x | 1 | 0...] so layer-1 bias folds into the matmul.
    x_aug = jnp.zeros((Bp, K1p), jnp.float32)
    x_aug = x_aug.at[:B, :state_dim].set(x.astype(jnp.float32))
    x_aug = x_aug.at[:, state_dim].set(1.0)

    kernel = functools.partial(actor_critic_kernel, action_dim=action_dim)

    out = pl.pallas_call(
        kernel,
        out_shape=jax.ShapeDtypeStruct((Bp, L), jnp.float32),
        grid_spec=pltpu.PrefetchScalarGridSpec(
            num_scalar_prefetch=0,
            grid=(Bp // tm,),
            in_specs=[
                pl.BlockSpec((tm, K1p), lambda i: (i, 0)),          # batch tile of x
                pl.BlockSpec((K1p + L, L), lambda i: (0, 0)),       # weights, VMEM-resident
            ],
            out_specs=pl.BlockSpec((tm, L), lambda i: (i, 0)),      # lane-dense [probs|value|0]
        ),
        compiler_params=pltpu.CompilerParams(
            dimension_semantics=("parallel",),     # shard batch grid across TCs (v7x)
            vmem_limit_bytes=32 << 20,             # explicit, safe on v5e/v6e/v7x; usage ≪ limit
        ),
    )(x_aug, slab)

    return out[:B, :action_dim], out[:B, action_dim:action_dim + 1]


def init_params(key, state_dim, hidden_dim, action_dim):
    """Deterministic init mimicking nn.Linear's U(-1/sqrt(fan_in), 1/sqrt(fan_in))."""
    ks = jax.random.split(key, 8)

    def linear(wk, bk, fan_in, fan_out):
        bound = 1.0 / jnp.sqrt(jnp.float32(fan_in))
        w = jax.random.uniform(wk, (fan_in, fan_out), jnp.float32, -bound, bound)
        b = jax.random.uniform(bk, (1, fan_out), jnp.float32, -bound, bound)
        return w, b

    wa1, ba1 = linear(ks[0], ks[1], state_dim, hidden_dim)
    wa2, ba2 = linear(ks[2], ks[3], hidden_dim, action_dim)
    wc1, bc1 = linear(ks[4], ks[5], state_dim, hidden_dim)
    wc2, bc2 = linear(ks[6], ks[7], hidden_dim, 1)
    return dict(wa1=wa1, ba1=ba1, wa2=wa2, ba2=ba2,
                wc1=wc1, bc1=bc1, wc2=wc2, bc2=bc2)


def reference_forward(x, p):
    """Pure-JAX reference reproducing the PyTorch module semantics."""
    h_a = jax.nn.relu(x @ p["wa1"] + p["ba1"])
    probs = jax.nn.softmax(h_a @ p["wa2"] + p["ba2"], axis=1)
    h_c = jax.nn.relu(x @ p["wc1"] + p["bc1"])
    values = h_c @ p["wc2"] + p["bc2"]
    return probs, values


if __name__ == "__main__":
    # Small shapes consistent with the module: batch=8, state_dim=16,
    # hidden_dim=32, action_dim=4.  (Real RL rollouts should batch many more
    # states per call -- the kernel is launch-bound at these sizes.)
    B, S, H, A = 8, 16, 32, 4

    key = jax.random.PRNGKey(0)
    kx, kp = jax.random.split(key)
    x = jax.random.normal(kx, (B, S), dtype=jnp.float32)
    params = init_params(kp, S, H, A)

    # One-time host-side weight packing (hoisted out of any RL loop).
    slab = pack_params(params)

    probs, values = actor_critic_forward(x, slab, state_dim=S, action_dim=A)
    jax.block_until_ready((probs, values))

    # Sanity check against the pure-JAX reference.
    ref_probs, ref_values = reference_forward(x, params)
    assert probs.shape == (B, A) and values.shape == (B, 1)
    assert jnp.allclose(probs, ref_probs, atol=1e-4, rtol=1e-4)
    assert jnp.allclose(values, ref_values, atol=1e-4, rtol=1e-4)
    assert jnp.allclose(jnp.sum(probs, axis=1), 1.0, atol=1e-5)

    print("KERNEL_OK")
</pallas_src>

<mosaic_0001>
module attributes {stable_mosaic.version = 11 : i64} {
  func.func @actor_critic_kernel(%arg0: i32, %arg1: memref<8x24xf32, #tpu.memory_space<vmem>>, %arg2: memref<152x128xf32, #tpu.memory_space<vmem>>, %arg3: memref<8x128xf32, #tpu.memory_space<vmem>>) attributes {dimension_semantics = [#tpu.dimension_semantics<parallel>], iteration_bounds = array<i64: 1>, scalar_prefetch = 0 : i64, scratch_operands = 0 : i64, tpu.core_type = #tpu.core_type<tc>, window_params = [{transform_indices = @transform_0, window_bounds = array<i64: 8, 24>}, {pipeline_mode = #tpu.pipeline_mode<synchronous>, transform_indices = @transform_1, window_bounds = array<i64: 152, 128>}, {transform_indices = @transform_2, window_bounds = array<i64: 8, 128>}]} {
    %c0 = arith.constant 0 : index
    %c0_0 = arith.constant 0 : index
    %0 = vector.load %arg1[%c0, %c0_0] : memref<8x24xf32, #tpu.memory_space<vmem>>, vector<8x24xf32>
    %c0_1 = arith.constant 0 : index
    %c0_2 = arith.constant 0 : index
    %1 = vector.load %arg2[%c0_1, %c0_2] : memref<152x128xf32, #tpu.memory_space<vmem>>, vector<24x128xf32>
    %c24 = arith.constant 24 : index
    %c0_3 = arith.constant 0 : index
    %2 = vector.load %arg2[%c24, %c0_3] : memref<152x128xf32, #tpu.memory_space<vmem>>, vector<128x128xf32>
    %cst = arith.constant dense<0.000000e+00> : vector<8x128xf32>
    %3 = tpu.matmul %0, %1, %cst {dimension_numbers = #tpu.dot_dimension_numbers<[1], [0], [0], [1], [0, 0, 1, 1], [], []>} : vector<8x24xf32>, vector<24x128xf32>, vector<8x128xf32> -> vector<8x128xf32>
    %cst_4 = arith.constant 0.000000e+00 : f32
    %4 = vector.broadcast %cst_4 : f32 to vector<8x128xf32>
    %5 = arith.maximumf %3, %4 : vector<8x128xf32>
    %cst_5 = arith.constant dense<0.000000e+00> : vector<8x128xf32>
    %6 = tpu.matmul %5, %2, %cst_5 {dimension_numbers = #tpu.dot_dimension_numbers<[1], [0], [0], [1], [0, 0, 1, 1], [], []>} : vector<8x128xf32>, vector<128x128xf32>, vector<8x128xf32> -> vector<8x128xf32>
    %7 = tpu.iota {dimensions = array<i32: 1>} : vector<8x128xi32>
    %c4_i32 = arith.constant 4 : i32
    %8 = vector.broadcast %c4_i32 : i32 to vector<8x128xi32>
    %9 = arith.cmpi slt, %7, %8 : vector<8x128xi32>
    %cst_6 = arith.constant -1.000000e+30 : f32
    %10 = vector.broadcast %cst_6 : f32 to vector<8x128xf32>
    %11 = arith.select %9, %6, %10 : vector<8x128xi1>, vector<8x128xf32>
    %cst_7 = arith.constant dense<0xFF800000> : vector<8xf32>
    %12 = vector.multi_reduction <maximumf>, %11, %cst_7 [1] : vector<8x128xf32> to vector<8xf32>
    %13 = vector.shape_cast %12 : vector<8xf32> to vector<8x1xf32>
    %14 = vector.broadcast %13 : vector<8x1xf32> to vector<8x128xf32>
    %15 = arith.subf %11, %14 : vector<8x128xf32>
    %16 = math.exp %15 : vector<8x128xf32>
    %cst_8 = arith.constant dense<0.000000e+00> : vector<8xf32>
    %17 = vector.multi_reduction <add>, %16, %cst_8 [1] : vector<8x128xf32> to vector<8xf32>
    %18 = vector.shape_cast %17 : vector<8xf32> to vector<8x1xf32>
    %19 = vector.broadcast %18 : vector<8x1xf32> to vector<8x128xf32>
    %20 = arith.divf %16, %19 : vector<8x128xf32>
    %21 = arith.select %9, %20, %6 : vector<8x128xi1>, vector<8x128xf32>
    %c0_9 = arith.constant 0 : index
    %c0_10 = arith.constant 0 : index
    %22 = vector.load %arg3[%c0_9, %c0_10] : memref<8x128xf32, #tpu.memory_space<vmem>>, vector<8x128xf32>
    tpu.vector_store %arg3[%c0_9, %c0_10], %21 {strides = array<i32>} : memref<8x128xf32, #tpu.memory_space<vmem>>, vector<8x128xf32>,
    return
  }
  func.func @transform_0(%arg0: i32) -> (i32, i32) {
    %c0_i32 = arith.constant 0 : i32
    %c0_i32_0 = arith.constant 0 : i32
    return %arg0, %c0_i32 : i32, i32
  }
  func.func @transform_1(%arg0: i32) -> (i32, i32) {
    %c0_i32 = arith.constant 0 : i32
    %c0_i32_0 = arith.constant 0 : i32
    %c0_i32_1 = arith.constant 0 : i32
    return %c0_i32, %c0_i32_0 : i32, i32
  }
  func.func @transform_2(%arg0: i32) -> (i32, i32) {
    %c0_i32 = arith.constant 0 : i32
    %c0_i32_0 = arith.constant 0 : i32
    return %arg0, %c0_i32 : i32, i32
  }
}

</mosaic_0001>

<llo_original>
// kernel: tpu_custom_call.1
$region0: #{tpu_custom_call.1}
  #allocation0 [shape = 'u32[]', space=smem, size = 0x4, offset = 0x4, fixed_abs, tag = 'smem constant byte address 0x4 - core index']
  #allocation1 [shape = 'u32[144,128]{1,0:T(1,128)}', space=vmem, size = 0x12000, scoped, tag = 'internal scratch']
  %s0 = inlined_call_operand.hbm [shape: f32[8,24], index: 0, kind: input, shape index: {}]
  %s1 = inlined_call_operand.hbm [shape: f32[152,128], index: 1, kind: input, shape index: {}]
  %s2 = inlined_call_operand.hbm [shape: f32[8,128], index: 2, kind: output, shape index: {}]
  %s3 = sld [smem:[#allocation0]]
  $region26: #{tpu_custom_call.1} parent=0
    _
  %s5 = ssub.s32 1, %s3
  %s6 = scalar_select 0, %s5, %s3
  $region1: #{tpu_custom_call.1} parent=0
    #allocation2 [shape = 'u8[4096]{0}', space=vmem, size = 0x1000, scoped, tag = 'input window, operand 0, single buffered']
    #allocation3 [shape = 's32[1]{0}', space=sflag, size = 0x4, scoped, tag = 'scoped memory for tpu_custom_call.1']
    #allocation4 [shape = 's32[1]{0}', space=sflag, size = 0x4, scoped, tag = 'scoped memory for tpu_custom_call.1']
    #allocation5 [shape = 'u8[77824]{0}', space=vmem, size = 0x13000, scoped, tag = 'input window, operand 1, single buffered']
    #allocation6 [shape = 's32[1]{0}', space=sflag, size = 0x4, scoped, tag = 'scoped memory for tpu_custom_call.1']
    #allocation7 [shape = 'u8[4096]{0}', space=vmem, size = 0x1000, scoped, tag = 'output window, operand 0, single buffered']
    %7 = vsyncpa [#allocation3], 0
    %8 = vsyncpa [#allocation6], 0
    %9 = vsyncpa [#allocation4], 0
    // Predicated region
    $region2: #{tpu_custom_call.1} parent=1 // pred_check
      _
    $region3: #{tpu_custom_call.1} parent=1 // pred_check_branch
      %11 = sbr.rel (0) target = $region5
    $region4: #{tpu_custom_call.1} parent=1 // pred_region
      %s13 = ssub.s32 128, 128
      %14 = vsyncadd [#allocation3], %s13
      %s16 = sshll.u32 [#allocation2], 4
      %s17 = int_to_ptr.vmem [resolvable:$true] %s16
      %19 = dma.hbm_to_vmem [thread:$0]  %s0, 128, %s17, [#allocation3]
    $region5: #{tpu_custom_call.1} parent=1 // pred_fallthru
      _
    // Predicated region
    $region6: #{tpu_custom_call.1} parent=1 // pred_check
      _
    $region7: #{tpu_custom_call.1} parent=1 // pred_check_branch
      %21 = sbr.rel (0) target = $region9
    $region8: #{tpu_custom_call.1} parent=1 // pred_region
      %s23 = ssub.s32 2432, 2432
      %24 = vsyncadd [#allocation6], %s23
      %s25 = sshll.u32 [#allocation5], 4
      %s26 = int_to_ptr.vmem [resolvable:$true] %s25
      %31 = dma.hbm_to_vmem [thread:$0]  %s1, 2432, %s26, [#allocation6], 128, 128, 8
    $region9: #{tpu_custom_call.1} parent=1 // pred_fallthru
      _
    // Predicated region
    $region10: #{tpu_custom_call.1} parent=1 // pred_check
      _
    $region11: #{tpu_custom_call.1} parent=1 // pred_check_branch
      %33 = sbr.rel (0) target = $region13
    $region12: #{tpu_custom_call.1} parent=1 // pred_region
      %34 = dma.done [#allocation3], 128
    $region13: #{tpu_custom_call.1} parent=1 // pred_fallthru
      _
    // Predicated region
    $region14: #{tpu_custom_call.1} parent=1 // pred_check
      _
    $region15: #{tpu_custom_call.1} parent=1 // pred_check_branch
      %36 = sbr.rel (0) target = $region17
    $region16: #{tpu_custom_call.1} parent=1 // pred_region
      %37 = dma.done [#allocation6], 2432
    $region17: #{tpu_custom_call.1} parent=1 // pred_fallthru
      _
    %v38 = vld [vmem:[#allocation2] sm:$0xff]
    %v39 = vld [vmem:[#allocation5] sm:$0xff]
    %v40 = vld [vmem:[#allocation5 + $0x8] sm:$0xff]
    %v41 = vld [vmem:[#allocation5 + $0x10] sm:$0xff]
    %v42 = vld [vmem:[#allocation5 + $0x18] sm:$0xff]
    %v43 = vld [vmem:[#allocation5 + $0x20] sm:$0xff]
    %v44 = vld [vmem:[#allocation5 + $0x28] sm:$0xff]
    %v45 = vld [vmem:[#allocation5 + $0x30] sm:$0xff]
    %v46 = vld [vmem:[#allocation5 + $0x38] sm:$0xff]
    %v47 = vld [vmem:[#allocation5 + $0x40] sm:$0xff]
    %v48 = vld [vmem:[#allocation5 + $0x48] sm:$0xff]
    %v49 = vld [vmem:[#allocation5 + $0x50] sm:$0xff]
    %v50 = vld [vmem:[#allocation5 + $0x58] sm:$0xff]
    %v51 = vld [vmem:[#allocation5 + $0x60] sm:$0xff]
    %v52 = vld [vmem:[#allocation5 + $0x68] sm:$0xff]
    %v53 = vld [vmem:[#allocation5 + $0x70] sm:$0xff]
    %v54 = vld [vmem:[#allocation5 + $0x78] sm:$0xff]
    %v55 = vld [vmem:[#allocation5 + $0x80] sm:$0xff]
    %v56 = vld [vmem:[#allocation5 + $0x88] sm:$0xff]
    %v57 = vld [vmem:[#allocation5 + $0x90] sm:$0xff]
    %vm58 = vcmask 195584
    %v60 = vsel %vm58, %v38, 0
    %62 = vmatprep.subr.mxu0 0.0
    %63 = vmatpush1.msra.mxu0 %v39
    %64 = vmatprep.subr.mxu0 0.0
    %65 = vmatpush1.msra.mxu0 %v40
    %66 = vmatprep.subr.mxu0 0.0
    %67 = vmatpush1.msra.mxu0 %v41
    %68 = vmatprep.subr.mxu0 0.0
    %69 = vmatpush1.msra.mxu0 0.0
    %70 = vmatprep.subr.mxu0 0.0
    %71 = vmatpush1.msra.mxu0 0.0
    %72 = vmatprep.subr.mxu0 0.0
    %73 = vmatpush1.msra.mxu0 0.0
    %74 = vmatprep.subr.mxu0 0.0
    %75 = vmatpush1.msra.mxu0 0.0
    %76 = vmatprep.subr.mxu0 0.0
    %77 = vmatpush1.msra.mxu0 0.0
    %78 = vmatprep.subr.mxu0 0.0
    %79 = vmatpush1.msra.mxu0 0.0
    %80 = vmatprep.subr.mxu0 0.0
    %81 = vmatpush1.msra.mxu0 0.0
    %82 = vmatprep.subr.mxu0 0.0
    %83 = vmatpush1.msra.mxu0 0.0
    %84 = vmatprep.subr.mxu0 0.0
    %85 = vmatpush1.msra.mxu0 0.0
    %86 = vmatprep.subr.mxu0 0.0
    %87 = vmatpush1.msra.mxu0 0.0
    %88 = vmatprep.subr.mxu0 0.0
    %89 = vmatpush1.msra.mxu0 0.0
    %90 = vmatprep.subr.mxu0 0.0
    %91 = vmatpush1.msra.mxu0 0.0
    %92 = vmatprep.subr.mxu0 0.0
    %93 = vmatpush1.msra.mxu0 0.0
    %94 = vmatprep.subr.mxu0 0.0
    %95 = vmatpush1.msra.mxu0 0.0
    %96 = vmatprep.subr.mxu0 0.0
    %97 = vmatpush1.msra.mxu0 0.0
    %98 = vmatprep.subr.mxu0 0.0
    %99 = vmatpush1.msra.mxu0 0.0
    %100 = vmatprep.subr.mxu0 0.0
    %101 = vmatpush1.msra.mxu0 0.0
    %102 = vmatprep.subr.mxu0 0.0
    %103 = vmatpush1.msra.mxu0 0.0
    %104 = vmatprep.subr.mxu0 0.0
    %105 = vmatpush1.msra.mxu0 0.0
    %106 = vmatprep.subr.mxu0 0.0
    %107 = vmatpush1.msra.mxu0 0.0
    %108 = vmatprep.subr.mxu0 0.0
    %109 = vmatpush1.msra.mxu0 0.0
    %110 = vmatprep.subr.mxu0 0.0
    %111 = vmatpush1.msra.mxu0 0.0
    %112 = vmatprep.subr.mxu0 0.0
    %113 = vmatpush1.msra.mxu0 0.0
    %114 = vmatprep.subr.mxu0 0.0
    %115 = vmatpush1.msra.mxu0 0.0
    %116 = vmatprep.subr.mxu0 0.0
    %117 = vmatpush1.msra.mxu0 0.0
    %118 = vmatprep.subr.mxu0 0.0
    %119 = vmatpush1.msra.mxu0 0.0
    %120 = vmatprep.subr.mxu0 0.0
    %121 = vmatpush1.msra.mxu0 0.0
    %122 = vmatprep.subr.mxu0 0.0
    %123 = vmatpush1.msra.mxu0 0.0
    %124 = vmatprep.subr.mxu0 0.0
    %125 = vmatpush1.msra.mxu0 0.0
    %126 = vmatprep.mubr.f32.mxu0 0.0
    %127 = vmatmul.mubr.f32.gmra.mrb[0].mxu0 %v60
    %v128 = vpop.f32.mrb[0].mxu0
    %v129 = vadd.f32 0.0, %v128
    %v130 = vpop.f32.mrb[0].mxu0
    %131 = vdwg.mxu0
    %v132 = vmax.f32 %v129, 0.0
    %133 = vmatprep.subr.mxu0 0.0
    %134 = vmatpush1.msra.mxu0 %v42
    %135 = vmatprep.subr.mxu0 0.0
    %136 = vmatpush1.msra.mxu0 %v43
    %137 = vmatprep.subr.mxu0 0.0
    %138 = vmatpush1.msra.mxu0 %v44
    %139 = vmatprep.subr.mxu0 0.0
    %140 = vmatpush1.msra.mxu0 %v45
    %141 = vmatprep.subr.mxu0 0.0
    %142 = vmatpush1.msra.mxu0 %v46
    %143 = vmatprep.subr.mxu0 0.0
    %144 = vmatpush1.msra.mxu0 %v47
    %145 = vmatprep.subr.mxu0 0.0
    %146 = vmatpush1.msra.mxu0 %v48
    %147 = vmatprep.subr.mxu0 0.0
    %148 = vmatpush1.msra.mxu0 %v49
    %149 = vmatprep.subr.mxu0 0.0
    %150 = vmatpush1.msra.mxu0 %v50
    %151 = vmatprep.subr.mxu0 0.0
    %152 = vmatpush1.msra.mxu0 %v51
    %153 = vmatprep.subr.mxu0 0.0
    %154 = vmatpush1.msra.mxu0 %v52
    %155 = vmatprep.subr.mxu0 0.0
    %156 = vmatpush1.msra.mxu0 %v53
    %157 = vmatprep.subr.mxu0 0.0
    %158 = vmatpush1.msra.mxu0 %v54
    %159 = vmatprep.subr.mxu0 0.0
    %160 = vmatpush1.msra.mxu0 %v55
    %161 = vmatprep.subr.mxu0 0.0
    %162 = vmatpush1.msra.mxu0 %v56
    %163 = vmatprep.subr.mxu0 0.0
    %164 = vmatpush1.msra.mxu0 %v57
    %165 = vmatprep.subr.mxu0 0.0
    %166 = vmatpush1.msra.mxu0 0.0
    %167 = vmatprep.subr.mxu0 0.0
    %168 = vmatpush1.msra.mxu0 0.0
    %169 = vmatprep.subr.mxu0 0.0
    %170 = vmatpush1.msra.mxu0 0.0
    %171 = vmatprep.subr.mxu0 0.0
    %172 = vmatpush1.msra.mxu0 0.0
    %173 = vmatprep.subr.mxu0 0.0
    %174 = vmatpush1.msra.mxu0 0.0
    %175 = vmatprep.subr.mxu0 0.0
    %176 = vmatpush1.msra.mxu0 0.0
    %177 = vmatprep.subr.mxu0 0.0
    %178 = vmatpush1.msra.mxu0 0.0
    %179 = vmatprep.subr.mxu0 0.0
    %180 = vmatpush1.msra.mxu0 0.0
    %181 = vmatprep.subr.mxu0 0.0
    %182 = vmatpush1.msra.mxu0 0.0
    %183 = vmatprep.subr.mxu0 0.0
    %184 = vmatpush1.msra.mxu0 0.0
    %185 = vmatprep.subr.mxu0 0.0
    %186 = vmatpush1.msra.mxu0 0.0
    %187 = vmatprep.subr.mxu0 0.0
    %188 = vmatpush1.msra.mxu0 0.0
    %189 = vmatprep.subr.mxu0 0.0
    %190 = vmatpush1.msra.mxu0 0.0
    %191 = vmatprep.subr.mxu0 0.0
    %192 = vmatpush1.msra.mxu0 0.0
    %193 = vmatprep.subr.mxu0 0.0
    %194 = vmatpush1.msra.mxu0 0.0
    %195 = vmatprep.subr.mxu0 0.0
    %196 = vmatpush1.msra.mxu0 0.0
    %197 = vmatprep.mubr.f32.mxu0 0.0
    %198 = vmatmul.mubr.f32.gmra.mrb[0].mxu0 %v132
    %v199 = vpop.f32.mrb[0].mxu0
    %v200 = vadd.f32 0.0, %v199
    %v201 = vpop.f32.mrb[0].mxu0
    %202 = vdwg.mxu0
    %v203 = vlaneseq
    %v204 = vand.u32 %v203, 127
    %vm205 = vcmp.lt.s32.totalorder %v204, 4
    %v206 = vsel %vm205, %v200, -1e+30
    %207 = vmax.xlane.f32.xlu0 %v206
    %v208 = vpop.xlane.xlu0 %207
    %v209 = vsub.f32 %v206, %v208
    %v210 = vmul.f32 %v209, 1.442695
    %v211 = vpow.pop %v210
    %212 = vadd.xlane.f32.xlu0 %v211
    %v213 = vpop.xlane.xlu0 %212
    %v214 = vrcp.pop %v213
    %v215 = vmul.f32 %v211, %v214
    %v216 = vsel %vm205, %v215, %v200
    %217 = vst [vmem:[#allocation7] sm:$0xff] %v216
    // Predicated region
    $region18: #{tpu_custom_call.1} parent=1 // pred_check
      _
    $region19: #{tpu_custom_call.1} parent=1 // pred_check_branch
      %219 = sbr.rel (0) target = $region21
    $region20: #{tpu_custom_call.1} parent=1 // pred_region
      %s221 = ssub.s32 128, 128
      %222 = vsyncadd [#allocation4], %s221
      %s224 = sshll.u32 [#allocation7], 4
      %s225 = int_to_ptr.vmem [resolvable:$true] %s224
      %227 = dma.vmem_to_hbm [thread:$0]  %s225, 128, %s2, [#allocation4]
    $region21: #{tpu_custom_call.1} parent=1 // pred_fallthru
      _
    // Predicated region
    $region22: #{tpu_custom_call.1} parent=1 // pred_check
      _
    $region23: #{tpu_custom_call.1} parent=1 // pred_check_branch
      %229 = sbr.rel (0) target = $region25
    $region24: #{tpu_custom_call.1} parent=1 // pred_region
      %230 = dma.done [#allocation4], 128
    $region25: #{tpu_custom_call.1} parent=1 // pred_fallthru
      _
    %231 = vsyncpa [#allocation3], 1
    %232 = vsyncpa [#allocation6], 1
    %233 = vsyncpa [#allocation4], 1

</llo_original>
